<compile_context>
chip_gen: v5e
topology: v5e:2x2
jax: 0.10.0
libtpu: 0.0.40
codegen_flags: <defaults>
</compile_context>

<pallas_src>
import functools

import jax
import jax.numpy as jnp
from jax.experimental import pallas as pl
from jax.experimental.pallas import tpu as pltpu

DIMS = 384          # sentence-embedding dim (matches `dims = 384` in NLI_BERT.py)
HIDDEN = 256        # classifier hidden size
NUM_CLASSES = 3     # entailment / neutral / contradiction
OUT_PAD = 128       # padded output width (lane-dense store)


def _round_up(x, m):
    return ((x + m - 1) // m) * m


def nli_classifier_kernel(claim_ref, evid_ref, w1c_ref, w1e_ref, b1_ref,
                          w2_ref, b2_ref, out_ref):
    """Classifier head tile: cat -> Linear(768,256) -> ReLU -> Linear(256,128pad)."""
    c = claim_ref[...]                       # (TB, 384) bf16
    e = evid_ref[...]                        # (TB, 384) bf16

    # Concatenation along dim=1 is folded into the first matmul by using the
    # pre-split claim / evidence halves of W1.  bf16 operands, f32 accumulation.
    h = jnp.dot(c, w1c_ref[...], preferred_element_type=jnp.float32)
    h = h + jnp.dot(e, w1e_ref[...], preferred_element_type=jnp.float32)
    h = jnp.maximum(h + b1_ref[...], 0.0)    # (TB, 256) f32 epilogue

    # Tiny second matmul: f32 activations (bf16 W2 promoted), f32 acc.
    logits = jnp.dot(h, w2_ref[...], preferred_element_type=jnp.float32)
    out_ref[...] = logits + b2_ref[...]      # (TB, 128) padded logits, f32


def prepare_params(w1, b1, w2, b2):
    """One-time parameter preprocessing (hoisted out of the per-call path).

    Weights stored in bf16 (halves the weight DMA, ~2x MXU on v6e/v7x);
    biases stay f32 for the f32 epilogue.  W1 is pre-split into its
    claim/evidence halves; W2/b2 are zero-padded to 128 output lanes.
    """
    w1_b = w1.astype(jnp.bfloat16)                                   # (768, 256)
    w1c = w1_b[:DIMS, :]                                             # (384, 256)
    w1e = w1_b[DIMS:, :]                                             # (384, 256)
    b1_2d = b1.reshape(1, HIDDEN).astype(jnp.float32)                # (1, 256)
    w2_p = (jnp.zeros((HIDDEN, OUT_PAD), jnp.bfloat16)
            .at[:, :NUM_CLASSES].set(w2.astype(jnp.bfloat16)))       # (256, 128)
    b2_p = (jnp.zeros((1, OUT_PAD), jnp.float32)
            .at[:, :NUM_CLASSES].set(b2.astype(jnp.float32)))        # (1, 128)
    return w1c, w1e, b1_2d, w2_p, b2_p


@functools.partial(jax.jit, static_argnames=("tb",))
def nli_classifier(claim_emb, evid_emb, w1c, w1e, b1_2d, w2_p, b2_p, *, tb=512):
    """Runs the classifier head on prepared (bf16/padded) parameters."""
    B = claim_emb.shape[0]

    # Embeddings travel in bf16 (no-op if already bf16).
    claim_b = claim_emb.astype(jnp.bfloat16)
    evid_b = evid_emb.astype(jnp.bfloat16)

    # Batch tile: 8-aligned, capped by the (padded) batch; pad B up to a
    # multiple of TB so every grid tile is full (no ragged last tile).
    TB = _round_up(min(tb, _round_up(B, 8)), 8)
    Bp = _round_up(B, TB)
    if Bp != B:
        pad = ((0, Bp - B), (0, 0))
        claim_b = jnp.pad(claim_b, pad)
        evid_b = jnp.pad(evid_b, pad)
    n_tiles = Bp // TB

    cost = pl.CostEstimate(
        flops=2 * Bp * (2 * DIMS * HIDDEN + HIDDEN * OUT_PAD),
        transcendentals=0,
        bytes_accessed=(2 * DIMS * HIDDEN + HIDDEN * OUT_PAD) * 2   # bf16 weights
        + (HIDDEN + OUT_PAD) * 4                                    # f32 biases
        + 2 * Bp * DIMS * 2                                         # bf16 embeddings
        + Bp * OUT_PAD * 4,                                         # f32 output
    )

    out_padded = pl.pallas_call(
        nli_classifier_kernel,
        out_shape=jax.ShapeDtypeStruct((Bp, OUT_PAD), jnp.float32),
        grid=(n_tiles,),
        in_specs=[
            # Batch-tiled embeddings (double-buffered by Pallas).
            pl.BlockSpec((TB, DIMS), lambda i: (i, 0)),
            pl.BlockSpec((TB, DIMS), lambda i: (i, 0)),
            # Weights / biases: constant index_map -> VMEM-resident across steps.
            pl.BlockSpec((DIMS, HIDDEN), lambda i: (0, 0)),
            pl.BlockSpec((DIMS, HIDDEN), lambda i: (0, 0)),
            pl.BlockSpec((1, HIDDEN), lambda i: (0, 0)),
            pl.BlockSpec((HIDDEN, OUT_PAD), lambda i: (0, 0)),
            pl.BlockSpec((1, OUT_PAD), lambda i: (0, 0)),
        ],
        out_specs=pl.BlockSpec((TB, OUT_PAD), lambda i: (i, 0)),
        compiler_params=pltpu.CompilerParams(
            dimension_semantics=("parallel",)),
        cost_estimate=cost,
    )(claim_b, evid_b, w1c, w1e, b1_2d, w2_p, b2_p)

    return out_padded[:B, :NUM_CLASSES]      # (B, 3) logits


def init_params(key):
    """Deterministic synthetic classifier parameters (shapes from __init__)."""
    k1, k2, k3, k4 = jax.random.split(key, 4)
    w1 = jax.random.normal(k1, (2 * DIMS, HIDDEN), jnp.float32) * 0.02
    b1 = jax.random.normal(k2, (HIDDEN,), jnp.float32) * 0.02
    w2 = jax.random.normal(k3, (HIDDEN, NUM_CLASSES), jnp.float32) * 0.02
    b2 = jax.random.normal(k4, (NUM_CLASSES,), jnp.float32) * 0.02
    return w1, b1, w2, b2


if __name__ == "__main__":
    key = jax.random.PRNGKey(0)
    k_claim, k_evid, k_params = jax.random.split(key, 3)

    B = 16  # small example batch
    # TODO(synk): SentenceTransformer.encode (pretrained BERT encoder) has no
    # Pallas equivalent here; stand-in embeddings are used as kernel inputs.
    claim_emb = jax.random.normal(k_claim, (B, DIMS), jnp.float32)
    evid_emb = jax.random.normal(k_evid, (B, DIMS), jnp.float32)

    w1, b1, w2, b2 = init_params(k_params)
    w1c, w1e, b1_2d, w2_p, b2_p = prepare_params(w1, b1, w2, b2)  # one-time prep

    # tb=8 -> 2 grid steps at B=16 (exercises the batch pipeline).
    logits = nli_classifier(claim_emb, evid_emb, w1c, w1e, b1_2d, w2_p, b2_p,
                            tb=8)
    jax.block_until_ready(logits)

    # Reference in plain JAX with the same bf16-rounded operands, f32 math.
    c32 = claim_emb.astype(jnp.bfloat16).astype(jnp.float32)
    e32 = evid_emb.astype(jnp.bfloat16).astype(jnp.float32)
    w1_32 = jnp.concatenate([w1c, w1e], axis=0).astype(jnp.float32)
    w2_32 = w2_p[:, :NUM_CLASSES].astype(jnp.float32)
    combined = jnp.concatenate([c32, e32], axis=1)
    h_ref = jnp.maximum(
        jnp.dot(combined, w1_32, precision=jax.lax.Precision.HIGHEST) + b1, 0.0)
    ref = jnp.dot(h_ref, w2_32, precision=jax.lax.Precision.HIGHEST) + b2

    assert logits.shape == (B, NUM_CLASSES)
    assert jnp.allclose(logits, ref, atol=1e-3, rtol=1e-3)

    print("KERNEL_OK")
</pallas_src>

<mosaic_0001>
module attributes {stable_mosaic.version = 11 : i64} {
  func.func @nli_classifier_kernel(%arg0: i32, %arg1: memref<8x384xbf16, #tpu.memory_space<vmem>>, %arg2: memref<8x384xbf16, #tpu.memory_space<vmem>>, %arg3: memref<384x256xbf16, #tpu.memory_space<vmem>>, %arg4: memref<384x256xbf16, #tpu.memory_space<vmem>>, %arg5: memref<1x256xf32, #tpu.memory_space<vmem>>, %arg6: memref<256x128xbf16, #tpu.memory_space<vmem>>, %arg7: memref<1x128xf32, #tpu.memory_space<vmem>>, %arg8: memref<8x128xf32, #tpu.memory_space<vmem>>) attributes {dimension_semantics = [#tpu.dimension_semantics<parallel>], iteration_bounds = array<i64: 2>, scalar_prefetch = 0 : i64, scratch_operands = 0 : i64, tpu.core_type = #tpu.core_type<tc>, window_params = [{transform_indices = @transform_0, window_bounds = array<i64: 8, 384>}, {transform_indices = @transform_1, window_bounds = array<i64: 8, 384>}, {pipeline_mode = #tpu.pipeline_mode<synchronous>, transform_indices = @transform_2, window_bounds = array<i64: 384, 256>}, {pipeline_mode = #tpu.pipeline_mode<synchronous>, transform_indices = @transform_3, window_bounds = array<i64: 384, 256>}, {pipeline_mode = #tpu.pipeline_mode<synchronous>, transform_indices = @transform_4, window_bounds = array<i64: 1, 256>}, {pipeline_mode = #tpu.pipeline_mode<synchronous>, transform_indices = @transform_5, window_bounds = array<i64: 256, 128>}, {pipeline_mode = #tpu.pipeline_mode<synchronous>, transform_indices = @transform_6, window_bounds = array<i64: 1, 128>}, {transform_indices = @transform_7, window_bounds = array<i64: 8, 128>}]} {
    %c0 = arith.constant 0 : index
    %c0_0 = arith.constant 0 : index
    %0 = vector.load %arg1[%c0, %c0_0] : memref<8x384xbf16, #tpu.memory_space<vmem>>, vector<8x384xbf16>
    %c0_1 = arith.constant 0 : index
    %c0_2 = arith.constant 0 : index
    %1 = vector.load %arg2[%c0_1, %c0_2] : memref<8x384xbf16, #tpu.memory_space<vmem>>, vector<8x384xbf16>
    %c0_3 = arith.constant 0 : index
    %c0_4 = arith.constant 0 : index
    %2 = vector.load %arg3[%c0_3, %c0_4] : memref<384x256xbf16, #tpu.memory_space<vmem>>, vector<384x256xbf16>
    %cst = arith.constant dense<0.000000e+00> : vector<8x256xf32>
    %3 = tpu.matmul %0, %2, %cst {dimension_numbers = #tpu.dot_dimension_numbers<[1], [0], [0], [1], [0, 0, 1, 1], [], []>} : vector<8x384xbf16>, vector<384x256xbf16>, vector<8x256xf32> -> vector<8x256xf32>
    %c0_5 = arith.constant 0 : index
    %c0_6 = arith.constant 0 : index
    %4 = vector.load %arg4[%c0_5, %c0_6] : memref<384x256xbf16, #tpu.memory_space<vmem>>, vector<384x256xbf16>
    %cst_7 = arith.constant dense<0.000000e+00> : vector<8x256xf32>
    %5 = tpu.matmul %1, %4, %cst_7 {dimension_numbers = #tpu.dot_dimension_numbers<[1], [0], [0], [1], [0, 0, 1, 1], [], []>} : vector<8x384xbf16>, vector<384x256xbf16>, vector<8x256xf32> -> vector<8x256xf32>
    %6 = arith.addf %3, %5 : vector<8x256xf32>
    %c0_8 = arith.constant 0 : index
    %c0_9 = arith.constant 0 : index
    %7 = vector.load %arg5[%c0_8, %c0_9] : memref<1x256xf32, #tpu.memory_space<vmem>>, vector<1x256xf32>
    %8 = vector.broadcast %7 : vector<1x256xf32> to vector<8x256xf32>
    %9 = arith.addf %6, %8 : vector<8x256xf32>
    %cst_10 = arith.constant 0.000000e+00 : f32
    %10 = vector.broadcast %cst_10 : f32 to vector<8x256xf32>
    %11 = arith.maximumf %9, %10 : vector<8x256xf32>
    %c0_11 = arith.constant 0 : index
    %c0_12 = arith.constant 0 : index
    %12 = vector.load %arg6[%c0_11, %c0_12] : memref<256x128xbf16, #tpu.memory_space<vmem>>, vector<256x128xbf16>
    %cst_13 = arith.constant dense<0.000000e+00> : vector<8x128xf32>
    %13 = tpu.matmul %11, %12, %cst_13 {dimension_numbers = #tpu.dot_dimension_numbers<[1], [0], [0], [1], [0, 0, 1, 1], [], []>} : vector<8x256xf32>, vector<256x128xbf16>, vector<8x128xf32> -> vector<8x128xf32>
    %c0_14 = arith.constant 0 : index
    %c0_15 = arith.constant 0 : index
    %14 = vector.load %arg7[%c0_14, %c0_15] : memref<1x128xf32, #tpu.memory_space<vmem>>, vector<1x128xf32>
    %15 = vector.broadcast %14 : vector<1x128xf32> to vector<8x128xf32>
    %16 = arith.addf %13, %15 : vector<8x128xf32>
    %c0_16 = arith.constant 0 : index
    %c0_17 = arith.constant 0 : index
    %17 = vector.load %arg8[%c0_16, %c0_17] : memref<8x128xf32, #tpu.memory_space<vmem>>, vector<8x128xf32>
    tpu.vector_store %arg8[%c0_16, %c0_17], %16 {strides = array<i32>} : memref<8x128xf32, #tpu.memory_space<vmem>>, vector<8x128xf32>,
    return
  }
  func.func @transform_0(%arg0: i32) -> (i32, i32) {
    %c0_i32 = arith.constant 0 : i32
    %c0_i32_0 = arith.constant 0 : i32
    return %arg0, %c0_i32 : i32, i32
  }
  func.func @transform_1(%arg0: i32) -> (i32, i32) {
    %c0_i32 = arith.constant 0 : i32
    %c0_i32_0 = arith.constant 0 : i32
    return %arg0, %c0_i32 : i32, i32
  }
  func.func @transform_2(%arg0: i32) -> (i32, i32) {
    %c0_i32 = arith.constant 0 : i32
    %c0_i32_0 = arith.constant 0 : i32
    %c0_i32_1 = arith.constant 0 : i32
    return %c0_i32, %c0_i32_0 : i32, i32
  }
  func.func @transform_3(%arg0: i32) -> (i32, i32) {
    %c0_i32 = arith.constant 0 : i32
    %c0_i32_0 = arith.constant 0 : i32
    %c0_i32_1 = arith.constant 0 : i32
    return %c0_i32, %c0_i32_0 : i32, i32
  }
  func.func @transform_4(%arg0: i32) -> (i32, i32) {
    %c0_i32 = arith.constant 0 : i32
    %c0_i32_0 = arith.constant 0 : i32
    %c0_i32_1 = arith.constant 0 : i32
    return %c0_i32, %c0_i32_0 : i32, i32
  }
  func.func @transform_5(%arg0: i32) -> (i32, i32) {
    %c0_i32 = arith.constant 0 : i32
    %c0_i32_0 = arith.constant 0 : i32
    %c0_i32_1 = arith.constant 0 : i32
    return %c0_i32, %c0_i32_0 : i32, i32
  }
  func.func @transform_6(%arg0: i32) -> (i32, i32) {
    %c0_i32 = arith.constant 0 : i32
    %c0_i32_0 = arith.constant 0 : i32
    %c0_i32_1 = arith.constant 0 : i32
    return %c0_i32, %c0_i32_0 : i32, i32
  }
  func.func @transform_7(%arg0: i32) -> (i32, i32) {
    %c0_i32 = arith.constant 0 : i32
    %c0_i32_0 = arith.constant 0 : i32
    return %arg0, %c0_i32 : i32, i32
  }
}

</mosaic_0001>

<llo_original>
// kernel: nli_classifier.1
$region0: #{nli_classifier.1}
  #allocation0 [shape = 'u32[]', space=smem, size = 0x4, offset = 0x4, fixed_abs, tag = 'smem constant byte address 0x4 - core index']
  #allocation1 [shape = 'u32[72,128]{1,0:T(1,128)}', space=vmem, size = 0x9000, scoped, tag = 'internal scratch']
  %s0 = inlined_call_operand.vmem [shape: bf16[16,384], index: 0, kind: input, shape index: {}]
  %s1 = inlined_call_operand.vmem [shape: bf16[16,384], index: 1, kind: input, shape index: {}]
  %s2 = inlined_call_operand.hbm [shape: bf16[384,256], index: 2, kind: input, shape index: {}]
  %s3 = inlined_call_operand.hbm [shape: bf16[384,256], index: 3, kind: input, shape index: {}]
  %s4 = inlined_call_operand.vmem [shape: f32[1,256], index: 4, kind: input, shape index: {}]
  %s5 = inlined_call_operand.vmem [shape: bf16[256,128], index: 5, kind: input, shape index: {}]
  %s6 = inlined_call_operand.vmem [shape: f32[1,128], index: 6, kind: input, shape index: {}]
  %s7 = inlined_call_operand.vmem [shape: f32[16,128], index: 7, kind: output, shape index: {}]
  %s8 = sld [smem:[#allocation0]]
  $region69: #{nli_classifier.1} parent=0
    _
  %s10 = ssub.s32 1, %s8
  %s11 = scalar_select 0, %s10, %s8
  $region1: #{nli_classifier.1} parent=0
    #allocation2 [shape = 'u8[196608]{0}', space=vmem, size = 0x30000, scoped, tag = 'input window, operand 2, single buffered']
    #allocation3 [shape = 's32[2]{0}', space=sflag, size = 0x8, scoped, tag = 'scoped memory for nli_classifier.1']
    #allocation4 [shape = 'u8[196608]{0}', space=vmem, size = 0x30000, scoped, tag = 'input window, operand 3, single buffered']
    #allocation5 [shape = 's32[1]{0}', space=sflag, size = 0x4, scoped, tag = 'scoped memory for nli_classifier.1']
    %12 = vsyncpa [#allocation3], 0
    %13 = vsyncpa [#allocation5], 0
    loop: start=0, step=1, limit=4
    $region2: #{nli_classifier.1} parent=1 // loop_pre_header
      _
    $region3: #{nli_classifier.1} parent=1 // loop_header
      %s15 = sphi 0, %s19
      %p16 = scmp.ge.s32.totalorder %s15, 4
      %s25 = sphi 0, %s27
      %s28 = sphi 0, %s25
      %s29 = sphi 0, %s28
      %s45 = sphi 0, %s29
      %s51 = sphi 0, %s53
      %s54 = sphi 0, %s51
      %s55 = sphi 0, %s54
      %s71 = sphi 0, %s55
      %s75 = sphi 0, %s75
      %s77 = sphi 0, %s75
      %s78 = sphi 0, %s77
      %s92 = sphi 0, %s78
      %s96 = sphi 0, %s96
      %s98 = sphi 0, %s96
      %s99 = sphi 0, %s98
      %s113 = sphi 0, %s99
      %s117 = sphi 0, %s117
      %s119 = sphi 0, %s117
      %s120 = sphi 0, %s119
      %s134 = sphi 0, %s120
      %s138 = sphi 0, %s138
      %s140 = sphi 0, %s138
      %s141 = sphi 0, %s140
      %s155 = sphi 0, %s141
      %s159 = sphi 0, %s159
      %s161 = sphi 0, %s159
      %s162 = sphi 0, %s161
      %s176 = sphi 0, %s162
      %s182 = sphi 0, %s184
      %s185 = sphi 0, %s182
      %s186 = sphi 0, %s185
      %s202 = sphi 0, %s186
    $region4: #{nli_classifier.1} parent=1 // loop_header_branch
      %18 = sbr.rel (%p16) target = $region8
    $region5: #{nli_classifier.1} parent=1 // loop_body
      %s20 = ssub.s32 %s15, 1
      %s21 = ssub.s32 %s15, 2
      %s22 = sadd.s32 %s15, 1
      %s23 = ssub.s32 %s15, %s22
      %p24 = scmp.eq.s32.totalorder %s23, 0
      %s26 = sadd.s32 %s25, 1
      %s27 = scalar_select %p24, %s25, %s26
      %p30 = pneg %p24
      %p31 = scmp.eq.s32.totalorder %s15, 1
      %p32 = por %p30, %p31
      %p33 = scmp.ne.s32.totalorder %s25, %s28
      %p34 = scmp.eq.s32.totalorder %s15, 0
      %p35 = por %p33, %p34
      %p36 = scmp.ne.s32.totalorder %s25, %s28
      %p37 = scmp.eq.s32.totalorder %s20, 1
      %p38 = por %p36, %p37
      %p39 = scmp.ne.s32.totalorder %s28, %s29
      %p40 = scmp.eq.s32.totalorder %s20, 0
      %p41 = por %p39, %p40
      %p42 = scmp.ne.s32.totalorder %s28, %s29
      %p43 = scmp.eq.s32.totalorder %s21, 1
      %p44 = por %p42, %p43
      %p46 = scmp.ne.s32.totalorder %s29, %s45
      %p47 = scmp.eq.s32.totalorder %s21, 0
      %p48 = por %p46, %p47
      %s49 = ssub.s32 %s15, %s22
      %p50 = scmp.eq.s32.totalorder %s49, 0
      %s52 = sadd.s32 %s51, 1
      %s53 = scalar_select %p50, %s51, %s52
      %p56 = pneg %p50
      %p57 = scmp.eq.s32.totalorder %s15, 1
      %p58 = por %p56, %p57
      %p59 = scmp.ne.s32.totalorder %s51, %s54
      %p60 = scmp.eq.s32.totalorder %s15, 0
      %p61 = por %p59, %p60
      %p62 = scmp.ne.s32.totalorder %s51, %s54
      %p63 = scmp.eq.s32.totalorder %s20, 1
      %p64 = por %p62, %p63
      %p65 = scmp.ne.s32.totalorder %s54, %s55
      %p66 = scmp.eq.s32.totalorder %s20, 0
      %p67 = por %p65, %p66
      %p68 = scmp.ne.s32.totalorder %s54, %s55
      %p69 = scmp.eq.s32.totalorder %s21, 1
      %p70 = por %p68, %p69
      %p72 = scmp.ne.s32.totalorder %s55, %s71
      %p73 = scmp.eq.s32.totalorder %s21, 0
      %p74 = por %p72, %p73
      %s76 = sadd.s32 %s75, 1
      %p79 = scmp.eq.s32.totalorder %s15, 1
      %p80 = scmp.ne.s32.totalorder %s75, %s77
      %p81 = scmp.eq.s32.totalorder %s15, 0
      %p82 = por %p80, %p81
      %p83 = scmp.ne.s32.totalorder %s75, %s77
      %p84 = scmp.eq.s32.totalorder %s20, 1
      %p85 = por %p83, %p84
      %p86 = scmp.ne.s32.totalorder %s77, %s78
      %p87 = scmp.eq.s32.totalorder %s20, 0
      %p88 = por %p86, %p87
      %p89 = scmp.ne.s32.totalorder %s77, %s78
      %p90 = scmp.eq.s32.totalorder %s21, 1
      %p91 = por %p89, %p90
      %p93 = scmp.ne.s32.totalorder %s78, %s92
      %p94 = scmp.eq.s32.totalorder %s21, 0
      %p95 = por %p93, %p94
      %s97 = sadd.s32 %s96, 1
      %p100 = scmp.eq.s32.totalorder %s15, 1
      %p101 = scmp.ne.s32.totalorder %s96, %s98
      %p102 = scmp.eq.s32.totalorder %s15, 0
      %p103 = por %p101, %p102
      %p104 = scmp.ne.s32.totalorder %s96, %s98
      %p105 = scmp.eq.s32.totalorder %s20, 1
      %p106 = por %p104, %p105
      %p107 = scmp.ne.s32.totalorder %s98, %s99
      %p108 = scmp.eq.s32.totalorder %s20, 0
      %p109 = por %p107, %p108
      %p110 = scmp.ne.s32.totalorder %s98, %s99
      %p111 = scmp.eq.s32.totalorder %s21, 1
      %p112 = por %p110, %p111
      %p114 = scmp.ne.s32.totalorder %s99, %s113
      %p115 = scmp.eq.s32.totalorder %s21, 0
      %p116 = por %p114, %p115
      %s118 = sadd.s32 %s117, 1
      %p121 = scmp.eq.s32.totalorder %s15, 1
      %p122 = scmp.ne.s32.totalorder %s117, %s119
      %p123 = scmp.eq.s32.totalorder %s15, 0
      %p124 = por %p122, %p123
      %p125 = scmp.ne.s32.totalorder %s117, %s119
      %p126 = scmp.eq.s32.totalorder %s20, 1
      %p127 = por %p125, %p126
      %p128 = scmp.ne.s32.totalorder %s119, %s120
      %p129 = scmp.eq.s32.totalorder %s20, 0
      %p130 = por %p128, %p129
      %p131 = scmp.ne.s32.totalorder %s119, %s120
      %p132 = scmp.eq.s32.totalorder %s21, 1
      %p133 = por %p131, %p132
      %p135 = scmp.ne.s32.totalorder %s120, %s134
      %p136 = scmp.eq.s32.totalorder %s21, 0
      %p137 = por %p135, %p136
      %s139 = sadd.s32 %s138, 1
      %p142 = scmp.eq.s32.totalorder %s15, 1
      %p143 = scmp.ne.s32.totalorder %s138, %s140
      %p144 = scmp.eq.s32.totalorder %s15, 0
      %p145 = por %p143, %p144
      %p146 = scmp.ne.s32.totalorder %s138, %s140
      %p147 = scmp.eq.s32.totalorder %s20, 1
      %p148 = por %p146, %p147
      %p149 = scmp.ne.s32.totalorder %s140, %s141
      %p150 = scmp.eq.s32.totalorder %s20, 0
      %p151 = por %p149, %p150
      %p152 = scmp.ne.s32.totalorder %s140, %s141
      %p153 = scmp.eq.s32.totalorder %s21, 1
      %p154 = por %p152, %p153
      %p156 = scmp.ne.s32.totalorder %s141, %s155
      %p157 = scmp.eq.s32.totalorder %s21, 0
      %p158 = por %p156, %p157
      %s160 = sadd.s32 %s159, 1
      %p163 = scmp.eq.s32.totalorder %s15, 1
      %p164 = scmp.ne.s32.totalorder %s159, %s161
      %p165 = scmp.eq.s32.totalorder %s15, 0
      %p166 = por %p164, %p165
      %p167 = scmp.ne.s32.totalorder %s159, %s161
      %p168 = scmp.eq.s32.totalorder %s20, 1
      %p169 = por %p167, %p168
      %p170 = scmp.ne.s32.totalorder %s161, %s162
      %p171 = scmp.eq.s32.totalorder %s20, 0
      %p172 = por %p170, %p171
      %p173 = scmp.ne.s32.totalorder %s161, %s162
      %p174 = scmp.eq.s32.totalorder %s21, 1
      %p175 = por %p173, %p174
      %p177 = scmp.ne.s32.totalorder %s162, %s176
      %p178 = scmp.eq.s32.totalorder %s21, 0
      %p179 = por %p177, %p178
      %s180 = ssub.s32 %s15, %s22
      %p181 = scmp.eq.s32.totalorder %s180, 0
      %s183 = sadd.s32 %s182, 1
      %s184 = scalar_select %p181, %s182, %s183
      %p187 = pneg %p181
      %p188 = scmp.eq.s32.totalorder %s15, 1
      %p189 = por %p187, %p188
      %p190 = scmp.ne.s32.totalorder %s182, %s185
      %p191 = scmp.eq.s32.totalorder %s15, 0
      %p192 = por %p190, %p191
      %p193 = scmp.ne.s32.totalorder %s182, %s185
      %p194 = scmp.eq.s32.totalorder %s20, 1
      %p195 = por %p193, %p194
      %p196 = scmp.ne.s32.totalorder %s185, %s186
      %p197 = scmp.eq.s32.totalorder %s20, 0
      %p198 = por %p196, %p197
      %p199 = scmp.ne.s32.totalorder %s185, %s186
      %p200 = scmp.eq.s32.totalorder %s21, 1
      %p201 = por %p199, %p200
      %p203 = scmp.ne.s32.totalorder %s186, %s202
      %p204 = scmp.eq.s32.totalorder %s21, 0
      %p205 = por %p203, %p204
      %p206 = scmp.le.s32.totalorder 1, %s15
      %p207 = scmp.lt.s32.totalorder %s15, 3
      %p208 = pnand %p206, %p207
      %p209 = pneg %p208
      // Predicated region
      $region9: #{nli_classifier.1} parent=5 // pred_check
        _
      $region10: #{nli_classifier.1} parent=5 // pred_check_branch
        %211 = sbr.rel (%p208) target = $region12
      $region11: #{nli_classifier.1} parent=5 // pred_region
        %s212 = ssub.s32 %s15, 1
        // Predicated region
        $region13: #{nli_classifier.1} parent=11 // pred_check
          %p213 = pneg %p88
        $region14: #{nli_classifier.1} parent=11 // pred_check_branch
          %215 = sbr.rel (%p213) target = $region16
        $region15: #{nli_classifier.1} parent=11 // pred_region
          %217 = vsyncadd [#allocation3], 0
          %s218 = sshll.u32 %s2, 4
          %s219 = int_to_ptr.hbm [resolvable:$true] %s218
          %s220 = sshll.u32 [#allocation2], 4
          %s221 = int_to_ptr.vmem [resolvable:$true] %s220
          %226 = dma.hbm_to_vmem [thread:$0]  %s219, 6144, %s221, [#allocation3], 128, 128, 8
        $region16: #{nli_classifier.1} parent=11 // pred_fallthru
          _
        // Predicated region
        $region17: #{nli_classifier.1} parent=11 // pred_check
          %p227 = pneg %p109
        $region18: #{nli_classifier.1} parent=11 // pred_check_branch
          %229 = sbr.rel (%p227) target = $region20
        $region19: #{nli_classifier.1} parent=11 // pred_region
          %231 = vsyncadd [#allocation5], 0
          %s232 = sshll.u32 %s3, 4
          %s233 = int_to_ptr.hbm [resolvable:$true] %s232
          %s234 = sshll.u32 [#allocation4], 4
          %s235 = int_to_ptr.vmem [resolvable:$true] %s234
          %240 = dma.hbm_to_vmem [thread:$0]  %s233, 6144, %s235, [#allocation5], 128, 128, 8
        $region20: #{nli_classifier.1} parent=11 // pred_fallthru
          _
        // Predicated region
        $region21: #{nli_classifier.1} parent=11 // pred_check
          %p241 = pneg %p130
        $region22: #{nli_classifier.1} parent=11 // pred_check_branch
          %243 = sbr.rel (%p241) target = $region24
        $region23: #{nli_classifier.1} parent=11 // pred_region
          _
        $region24: #{nli_classifier.1} parent=11 // pred_fallthru
          _
        // Predicated region
        $region25: #{nli_classifier.1} parent=11 // pred_check
          %p244 = pneg %p151
        $region26: #{nli_classifier.1} parent=11 // pred_check_branch
          %246 = sbr.rel (%p244) target = $region28
        $region27: #{nli_classifier.1} parent=11 // pred_region
          _
        $region28: #{nli_classifier.1} parent=11 // pred_fallthru
          _
        // Predicated region
        $region29: #{nli_classifier.1} parent=11 // pred_check
          %p247 = pneg %p172
        $region30: #{nli_classifier.1} parent=11 // pred_check_branch
          %249 = sbr.rel (%p247) target = $region32
        $region31: #{nli_classifier.1} parent=11 // pred_region
          _
        $region32: #{nli_classifier.1} parent=11 // pred_fallthru
          _
      $region12: #{nli_classifier.1} parent=5 // pred_fallthru
        _
      %p250 = scmp.lt.s32.totalorder %s15, 2
      // Predicated region
      $region33: #{nli_classifier.1} parent=5 // pred_check
        %p251 = pneg %p250
      $region34: #{nli_classifier.1} parent=5 // pred_check_branch
        %253 = sbr.rel (%p251) target = $region36
      $region35: #{nli_classifier.1} parent=5 // pred_region
        // Predicated region
        $region37: #{nli_classifier.1} parent=35 // pred_check
          %p254 = pneg %p35
        $region38: #{nli_classifier.1} parent=35 // pred_check_branch
          %256 = sbr.rel (%p254) target = $region40
        $region39: #{nli_classifier.1} parent=35 // pred_region
          %p257 = scmp.lt.s32.totalorder %s15, 1
          %s258 = scalar_select %p257, %s15, 1
          %s259 = smul.addr %s258, 3
          %s260 = smul.addr %s259, 4
          %s261 = scalar_lea.vmem %s0, %s260
        $region40: #{nli_classifier.1} parent=35 // pred_fallthru
          _
        // Predicated region
        $region41: #{nli_classifier.1} parent=35 // pred_check
          %p262 = pneg %p61
        $region42: #{nli_classifier.1} parent=35 // pred_check_branch
          %264 = sbr.rel (%p262) target = $region44
        $region43: #{nli_classifier.1} parent=35 // pred_region
          %p265 = scmp.lt.s32.totalorder %s15, 1
          %s266 = scalar_select %p265, %s15, 1
          %s267 = smul.addr %s266, 3
          %s268 = smul.addr %s267, 4
          %s269 = scalar_lea.vmem %s1, %s268
        $region44: #{nli_classifier.1} parent=35 // pred_fallthru
          _
      $region36: #{nli_classifier.1} parent=5 // pred_fallthru
        _
      %p270 = scmp.le.s32.totalorder 1, %s15
      %p271 = scmp.lt.s32.totalorder %s15, 3
      %p272 = pnand %p270, %p271
      %p273 = pneg %p272
      // Predicated region
      $region45: #{nli_classifier.1} parent=5 // pred_check
        _
      $region46: #{nli_classifier.1} parent=5 // pred_check_branch
        %275 = sbr.rel (%p272) target = $region48
      $region47: #{nli_classifier.1} parent=5 // pred_region
        %s276 = ssub.s32 %s15, 1
        // Predicated region
        $region49: #{nli_classifier.1} parent=47 // pred_check
          %p277 = pneg %p88
        $region50: #{nli_classifier.1} parent=47 // pred_check_branch
          %279 = sbr.rel (%p277) target = $region52
        $region51: #{nli_classifier.1} parent=47 // pred_region
          %281 = dma.done [#allocation3], 6144
        $region52: #{nli_classifier.1} parent=47 // pred_fallthru
          _
        // Predicated region
        $region53: #{nli_classifier.1} parent=47 // pred_check
          %p282 = pneg %p109
        $region54: #{nli_classifier.1} parent=47 // pred_check_branch
          %284 = sbr.rel (%p282) target = $region56
        $region55: #{nli_classifier.1} parent=47 // pred_region
          %286 = dma.done [#allocation5], 6144
        $region56: #{nli_classifier.1} parent=47 // pred_fallthru
          _
        %p287 = scmp.lt.s32.totalorder %s20, 1
        %s288 = scalar_select %p287, %s20, 1
        %s289 = smul.addr %s288, 3
        %s290 = smul.addr %s289, 4
        %s291 = scalar_lea.vmem %s0, %s290
        %p292 = pneg %p41
        %p293 = pneg %p38
        %p294 = scmp.lt.s32.totalorder %s20, 1
        %s295 = scalar_select %p294, %s20, 1
        %s296 = smul.addr %s295, 3
        %s297 = smul.addr %s296, 4
        %s298 = scalar_lea.vmem %s1, %s297
        %p299 = pneg %p67
        %p300 = pneg %p64
        %p301 = pneg %p88
        %p302 = pneg %p85
        %p303 = pneg %p109
        %p304 = pneg %p106
        %p305 = pneg %p130
        %p306 = pneg %p127
        %p307 = pneg %p151
        %p308 = pneg %p148
        %p309 = pneg %p172
        %p310 = pneg %p169
        %p311 = pneg %p198
        %p312 = pneg %p195
        %p313 = scmp.lt.s32.totalorder %s20, 1
        %s314 = scalar_select %p313, %s20, 1
        %s315 = smul.addr %s314, 8
        %s316 = scalar_lea.vmem %s7, %s315
        %p317 = scmp.lt.s32.totalorder %s20, 1
        %s318 = scalar_select %p317, %s20, 1
        %s319 = smul.addr %s318, 3
        %s320 = smul.addr %s319, 4
        %s321 = scalar_lea.vmem %s0, %s320
        %p322 = scmp.lt.s32.totalorder %s20, 1
        %s323 = scalar_select %p322, %s20, 1
        %s324 = smul.addr %s323, 3
        %s325 = smul.addr %s324, 4
        %s326 = scalar_lea.vmem %s1, %s325
        %p327 = scmp.lt.s32.totalorder %s20, 1
        %s328 = scalar_select %p327, %s20, 1
        %s329 = smul.addr %s328, 8
        %s330 = scalar_lea.vmem %s7, %s329
        %v331 = vld [vmem:[%s321] sm:$0xff]
        %v332 = vld [vmem:[%s321 + $0x8] sm:$0xf]
        %v333 = vld [vmem:[%s326] sm:$0xff]
        %v334 = vld [vmem:[%s326 + $0x8] sm:$0xf]
        %v335 = vld [vmem:[#allocation2] sm:$0xff]
        %v336 = vld [vmem:[#allocation2 + $0x8] sm:$0xff]
        %v337 = vld [vmem:[#allocation2 + $0x10] sm:$0xff]
        %v338 = vld [vmem:[#allocation2 + $0x18] sm:$0xff]
        %v339 = vld [vmem:[#allocation2 + $0x20] sm:$0xff]
        %v340 = vld [vmem:[#allocation2 + $0x28] sm:$0xff]
        %v341 = vld [vmem:[#allocation2 + $0x30] sm:$0xff]
        %v342 = vld [vmem:[#allocation2 + $0x38] sm:$0xff]
        %v343 = vld [vmem:[#allocation2 + $0x40] sm:$0xff]
        %v344 = vld [vmem:[#allocation2 + $0x48] sm:$0xff]
        %v345 = vld [vmem:[#allocation2 + $0x50] sm:$0xff]
        %v346 = vld [vmem:[#allocation2 + $0x58] sm:$0xff]
        %v347 = vld [vmem:[#allocation2 + $0x60] sm:$0xff]
        %v348 = vld [vmem:[#allocation2 + $0x68] sm:$0xff]
        %v349 = vld [vmem:[#allocation2 + $0x70] sm:$0xff]
        %v350 = vld [vmem:[#allocation2 + $0x78] sm:$0xff]
        %v351 = vld [vmem:[#allocation2 + $0x80] sm:$0xff]
        %v352 = vld [vmem:[#allocation2 + $0x88] sm:$0xff]
        %v353 = vld [vmem:[#allocation2 + $0x90] sm:$0xff]
        %v354 = vld [vmem:[#allocation2 + $0x98] sm:$0xff]
        %v355 = vld [vmem:[#allocation2 + $0xa0] sm:$0xff]
        %v356 = vld [vmem:[#allocation2 + $0xa8] sm:$0xff]
        %v357 = vld [vmem:[#allocation2 + $0xb0] sm:$0xff]
        %v358 = vld [vmem:[#allocation2 + $0xb8] sm:$0xff]
        %v359 = vld [vmem:[#allocation2 + $0xc0] sm:$0xff]
        %v360 = vld [vmem:[#allocation2 + $0xc8] sm:$0xff]
        %v361 = vld [vmem:[#allocation2 + $0xd0] sm:$0xff]
        %v362 = vld [vmem:[#allocation2 + $0xd8] sm:$0xff]
        %v363 = vld [vmem:[#allocation2 + $0xe0] sm:$0xff]
        %v364 = vld [vmem:[#allocation2 + $0xe8] sm:$0xff]
        %v365 = vld [vmem:[#allocation2 + $0xf0] sm:$0xff]
        %v366 = vld [vmem:[#allocation2 + $0xf8] sm:$0xff]
        %v367 = vld [vmem:[#allocation2 + $0x100] sm:$0xff]
        %v368 = vld [vmem:[#allocation2 + $0x108] sm:$0xff]
        %v369 = vld [vmem:[#allocation2 + $0x110] sm:$0xff]
        %v370 = vld [vmem:[#allocation2 + $0x118] sm:$0xff]
        %v371 = vld [vmem:[#allocation2 + $0x120] sm:$0xff]
        %v372 = vld [vmem:[#allocation2 + $0x128] sm:$0xff]
        %v373 = vld [vmem:[#allocation2 + $0x130] sm:$0xff]
        %v374 = vld [vmem:[#allocation2 + $0x138] sm:$0xff]
        %v375 = vld [vmem:[#allocation2 + $0x140] sm:$0xff]
        %v376 = vld [vmem:[#allocation2 + $0x148] sm:$0xff]
        %v377 = vld [vmem:[#allocation2 + $0x150] sm:$0xff]
        %v378 = vld [vmem:[#allocation2 + $0x158] sm:$0xff]
        %v379 = vld [vmem:[#allocation2 + $0x160] sm:$0xff]
        %v380 = vld [vmem:[#allocation2 + $0x168] sm:$0xff]
        %v381 = vld [vmem:[#allocation2 + $0x170] sm:$0xff]
        %v382 = vld [vmem:[#allocation2 + $0x178] sm:$0xff]
        %v383 = vld [vmem:[#allocation4] sm:$0xff]
        %v384 = vld [vmem:[#allocation4 + $0x8] sm:$0xff]
        %v385 = vld [vmem:[#allocation4 + $0x10] sm:$0xff]
        %v386 = vld [vmem:[#allocation4 + $0x18] sm:$0xff]
        %v387 = vld [vmem:[#allocation4 + $0x20] sm:$0xff]
        %v388 = vld [vmem:[#allocation4 + $0x28] sm:$0xff]
        %v389 = vld [vmem:[#allocation4 + $0x30] sm:$0xff]
        %v390 = vld [vmem:[#allocation4 + $0x38] sm:$0xff]
        %v391 = vld [vmem:[#allocation4 + $0x40] sm:$0xff]
        %v392 = vld [vmem:[#allocation4 + $0x48] sm:$0xff]
        %v393 = vld [vmem:[#allocation4 + $0x50] sm:$0xff]
        %v394 = vld [vmem:[#allocation4 + $0x58] sm:$0xff]
        %v395 = vld [vmem:[#allocation4 + $0x60] sm:$0xff]
        %v396 = vld [vmem:[#allocation4 + $0x68] sm:$0xff]
        %v397 = vld [vmem:[#allocation4 + $0x70] sm:$0xff]
        %v398 = vld [vmem:[#allocation4 + $0x78] sm:$0xff]
        %v399 = vld [vmem:[#allocation4 + $0x80] sm:$0xff]
        %v400 = vld [vmem:[#allocation4 + $0x88] sm:$0xff]
        %v401 = vld [vmem:[#allocation4 + $0x90] sm:$0xff]
        %v402 = vld [vmem:[#allocation4 + $0x98] sm:$0xff]
        %v403 = vld [vmem:[#allocation4 + $0xa0] sm:$0xff]
        %v404 = vld [vmem:[#allocation4 + $0xa8] sm:$0xff]
        %v405 = vld [vmem:[#allocation4 + $0xb0] sm:$0xff]
        %v406 = vld [vmem:[#allocation4 + $0xb8] sm:$0xff]
        %v407 = vld [vmem:[#allocation4 + $0xc0] sm:$0xff]
        %v408 = vld [vmem:[#allocation4 + $0xc8] sm:$0xff]
        %v409 = vld [vmem:[#allocation4 + $0xd0] sm:$0xff]
        %v410 = vld [vmem:[#allocation4 + $0xd8] sm:$0xff]
        %v411 = vld [vmem:[#allocation4 + $0xe0] sm:$0xff]
        %v412 = vld [vmem:[#allocation4 + $0xe8] sm:$0xff]
        %v413 = vld [vmem:[#allocation4 + $0xf0] sm:$0xff]
        %v414 = vld [vmem:[#allocation4 + $0xf8] sm:$0xff]
        %v415 = vld [vmem:[#allocation4 + $0x100] sm:$0xff]
        %v416 = vld [vmem:[#allocation4 + $0x108] sm:$0xff]
        %v417 = vld [vmem:[#allocation4 + $0x110] sm:$0xff]
        %v418 = vld [vmem:[#allocation4 + $0x118] sm:$0xff]
        %v419 = vld [vmem:[#allocation4 + $0x120] sm:$0xff]
        %v420 = vld [vmem:[#allocation4 + $0x128] sm:$0xff]
        %v421 = vld [vmem:[#allocation4 + $0x130] sm:$0xff]
        %v422 = vld [vmem:[#allocation4 + $0x138] sm:$0xff]
        %v423 = vld [vmem:[#allocation4 + $0x140] sm:$0xff]
        %v424 = vld [vmem:[#allocation4 + $0x148] sm:$0xff]
        %v425 = vld [vmem:[#allocation4 + $0x150] sm:$0xff]
        %v426 = vld [vmem:[#allocation4 + $0x158] sm:$0xff]
        %v427 = vld [vmem:[#allocation4 + $0x160] sm:$0xff]
        %v428 = vld [vmem:[#allocation4 + $0x168] sm:$0xff]
        %v429 = vld [vmem:[#allocation4 + $0x170] sm:$0xff]
        %v430 = vld [vmem:[#allocation4 + $0x178] sm:$0xff]
        %v433 = vunpack.c.l.b16 %v333
        %v434 = vunpack.c.h.b16 %v333
        %v435 = vunpack.c.l.b16 %v334
        %v436 = vpack.c.b16 %v433, %v433
        %v437 = vpack.c.b16 %v434, %v434
        %v438 = vpack.c.b16 %v435, %v435
        %v490 = vunpack.c.l.b16 %v383
        %v491 = vunpack.c.h.b16 %v383
        %v492 = vunpack.c.l.b16 %v384
        %v493 = vunpack.c.h.b16 %v384
        %v494 = vunpack.c.l.b16 %v385
        %v495 = vunpack.c.h.b16 %v385
        %v496 = vunpack.c.l.b16 %v386
        %v497 = vunpack.c.h.b16 %v386
        %v498 = vunpack.c.l.b16 %v387
        %v499 = vunpack.c.h.b16 %v387
        %v500 = vunpack.c.l.b16 %v388
        %v501 = vunpack.c.h.b16 %v388
        %v502 = vunpack.c.l.b16 %v389
        %v503 = vunpack.c.h.b16 %v389
        %v504 = vunpack.c.l.b16 %v390
        %v505 = vunpack.c.h.b16 %v390
        %v506 = vunpack.c.l.b16 %v391
        %v507 = vunpack.c.h.b16 %v391
        %v508 = vunpack.c.l.b16 %v392
        %v509 = vunpack.c.h.b16 %v392
        %v510 = vunpack.c.l.b16 %v393
        %v511 = vunpack.c.h.b16 %v393
        %v512 = vunpack.c.l.b16 %v394
        %v513 = vunpack.c.h.b16 %v394
        %v514 = vunpack.c.l.b16 %v395
        %v515 = vunpack.c.h.b16 %v395
        %v516 = vunpack.c.l.b16 %v396
        %v517 = vunpack.c.h.b16 %v396
        %v518 = vunpack.c.l.b16 %v397
        %v519 = vunpack.c.h.b16 %v397
        %v520 = vunpack.c.l.b16 %v398
        %v521 = vunpack.c.h.b16 %v398
        %v522 = vunpack.c.l.b16 %v399
        %v523 = vunpack.c.h.b16 %v399
        %v524 = vunpack.c.l.b16 %v400
        %v525 = vunpack.c.h.b16 %v400
        %v526 = vunpack.c.l.b16 %v401
        %v527 = vunpack.c.h.b16 %v401
        %v528 = vunpack.c.l.b16 %v402
        %v529 = vunpack.c.h.b16 %v402
        %v530 = vunpack.c.l.b16 %v403
        %v531 = vunpack.c.h.b16 %v403
        %v532 = vunpack.c.l.b16 %v404
        %v533 = vunpack.c.h.b16 %v404
        %v534 = vunpack.c.l.b16 %v405
        %v535 = vunpack.c.h.b16 %v405
        %v536 = vunpack.c.l.b16 %v406
        %v537 = vunpack.c.h.b16 %v406
        %v538 = vunpack.c.l.b16 %v407
        %v539 = vunpack.c.h.b16 %v407
        %v540 = vunpack.c.l.b16 %v408
        %v541 = vunpack.c.h.b16 %v408
        %v542 = vunpack.c.l.b16 %v409
        %v543 = vunpack.c.h.b16 %v409
        %v544 = vunpack.c.l.b16 %v410
        %v545 = vunpack.c.h.b16 %v410
        %v546 = vunpack.c.l.b16 %v411
        %v547 = vunpack.c.h.b16 %v411
        %v548 = vunpack.c.l.b16 %v412
        %v549 = vunpack.c.h.b16 %v412
        %v550 = vunpack.c.l.b16 %v413
        %v551 = vunpack.c.h.b16 %v413
        %v552 = vunpack.c.l.b16 %v414
        %v553 = vunpack.c.h.b16 %v414
        %v554 = vunpack.c.l.b16 %v415
        %v555 = vunpack.c.h.b16 %v415
        %v556 = vunpack.c.l.b16 %v416
        %v557 = vunpack.c.h.b16 %v416
        %v558 = vunpack.c.l.b16 %v417
        %v559 = vunpack.c.h.b16 %v417
        %v560 = vunpack.c.l.b16 %v418
        %v561 = vunpack.c.h.b16 %v418
        %v562 = vunpack.c.l.b16 %v419
        %v563 = vunpack.c.h.b16 %v419
        %v564 = vunpack.c.l.b16 %v420
        %v565 = vunpack.c.h.b16 %v420
        %v566 = vunpack.c.l.b16 %v421
        %v567 = vunpack.c.h.b16 %v421
        %v568 = vunpack.c.l.b16 %v422
        %v569 = vunpack.c.h.b16 %v422
        %v570 = vunpack.c.l.b16 %v423
        %v571 = vunpack.c.h.b16 %v423
        %v572 = vunpack.c.l.b16 %v424
        %v573 = vunpack.c.h.b16 %v424
        %v574 = vunpack.c.l.b16 %v425
        %v575 = vunpack.c.h.b16 %v425
        %v576 = vunpack.c.l.b16 %v426
        %v577 = vunpack.c.h.b16 %v426
        %v578 = vunpack.c.l.b16 %v427
        %v579 = vunpack.c.h.b16 %v427
        %v580 = vunpack.c.l.b16 %v428
        %v581 = vunpack.c.h.b16 %v428
        %v582 = vunpack.c.l.b16 %v429
        %v583 = vunpack.c.h.b16 %v429
        %v584 = vunpack.c.l.b16 %v430
        %v585 = vunpack.c.h.b16 %v430
        %v586 = vpack.c.b16 %v492, %v490
        %v587 = vpack.c.b16 %v493, %v491
        %v588 = vpack.c.b16 %v496, %v494
        %v589 = vpack.c.b16 %v497, %v495
        %v590 = vpack.c.b16 %v500, %v498
        %v591 = vpack.c.b16 %v501, %v499
        %v592 = vpack.c.b16 %v504, %v502
        %v593 = vpack.c.b16 %v505, %v503
        %v594 = vpack.c.b16 %v508, %v506
        %v595 = vpack.c.b16 %v509, %v507
        %v596 = vpack.c.b16 %v512, %v510
        %v597 = vpack.c.b16 %v513, %v511
        %v598 = vpack.c.b16 %v516, %v514
        %v599 = vpack.c.b16 %v517, %v515
        %v600 = vpack.c.b16 %v520, %v518
        %v601 = vpack.c.b16 %v521, %v519
        %v602 = vpack.c.b16 %v524, %v522
        %v603 = vpack.c.b16 %v525, %v523
        %v604 = vpack.c.b16 %v528, %v526
        %v605 = vpack.c.b16 %v529, %v527
        %v606 = vpack.c.b16 %v532, %v530
        %v607 = vpack.c.b16 %v533, %v531
        %v608 = vpack.c.b16 %v536, %v534
        %v609 = vpack.c.b16 %v537, %v535
        %v610 = vpack.c.b16 %v540, %v538
        %v611 = vpack.c.b16 %v541, %v539
        %v612 = vpack.c.b16 %v544, %v542
        %v613 = vpack.c.b16 %v545, %v543
        %v614 = vpack.c.b16 %v548, %v546
        %v615 = vpack.c.b16 %v549, %v547
        %v616 = vpack.c.b16 %v552, %v550
        %v617 = vpack.c.b16 %v553, %v551
        %v618 = vpack.c.b16 %v556, %v554
        %v619 = vpack.c.b16 %v557, %v555
        %v620 = vpack.c.b16 %v560, %v558
        %v621 = vpack.c.b16 %v561, %v559
        %v622 = vpack.c.b16 %v564, %v562
        %v623 = vpack.c.b16 %v565, %v563
        %v624 = vpack.c.b16 %v568, %v566
        %v625 = vpack.c.b16 %v569, %v567
        %v626 = vpack.c.b16 %v572, %v570
        %v627 = vpack.c.b16 %v573, %v571
        %v628 = vpack.c.b16 %v576, %v574
        %v629 = vpack.c.b16 %v577, %v575
        %v630 = vpack.c.b16 %v580, %v578
        %v631 = vpack.c.b16 %v581, %v579
        %v632 = vpack.c.b16 %v584, %v582
        %v633 = vpack.c.b16 %v585, %v583
        %682 = vmatpush.bf16.msra.mxu0 %v600
        %683 = vmatpush.bf16.msra.mxu0 %v598
        %684 = vmatpush.bf16.msra.mxu0 %v596
        %685 = vmatpush.bf16.msra.mxu0 %v594
        %686 = vmatpush.bf16.msra.mxu0 %v592
        %687 = vmatpush.bf16.msra.mxu0 %v590
        %688 = vmatpush.bf16.msra.mxu0 %v588
        %689 = vmatpush.bf16.msra.mxu0 %v586
        %690 = vmatmul.bf16.gmra.mxu0 %v436
        %v691 = vpop.f32.mrf.mxu0
        %v692 = vadd.f32 0.0, %v691
        %v693 = vpop.f32.mrf.mxu0
        %694 = vdwg.mxu0
        %695 = vmatpush.bf16.msra.mxu0 %v616
        %696 = vmatpush.bf16.msra.mxu0 %v614
        %697 = vmatpush.bf16.msra.mxu0 %v612
        %698 = vmatpush.bf16.msra.mxu0 %v610
        %699 = vmatpush.bf16.msra.mxu0 %v608
        %700 = vmatpush.bf16.msra.mxu0 %v606
        %701 = vmatpush.bf16.msra.mxu0 %v604
        %702 = vmatpush.bf16.msra.mxu0 %v602
        %703 = vmatmul.bf16.gmra.mxu0 %v437
        %v704 = vpop.f32.mrf.mxu0
        %v705 = vadd.f32 %v692, %v704
        %v706 = vpop.f32.mrf.mxu0
        %707 = vdwg.mxu0
        %708 = vmatpush.bf16.msra.mxu0 %v632
        %709 = vmatpush.bf16.msra.mxu0 %v630
        %710 = vmatpush.bf16.msra.mxu0 %v628
        %711 = vmatpush.bf16.msra.mxu0 %v626
        %712 = vmatpush.bf16.msra.mxu0 %v624
        %713 = vmatpush.bf16.msra.mxu0 %v622
        %714 = vmatpush.bf16.msra.mxu0 %v620
        %715 = vmatpush.bf16.msra.mxu0 %v618
        %716 = vmatmul.bf16.gmra.mxu0 %v438
        %v717 = vpop.f32.mrf.mxu0
        %v718 = vadd.f32 %v705, %v717
        %v719 = vpop.f32.mrf.mxu0
        %720 = vdwg.mxu0
        %721 = vmatpush.bf16.msra.mxu0 %v601
        %722 = vmatpush.bf16.msra.mxu0 %v599
        %723 = vmatpush.bf16.msra.mxu0 %v597
        %724 = vmatpush.bf16.msra.mxu0 %v595
        %725 = vmatpush.bf16.msra.mxu0 %v593
        %726 = vmatpush.bf16.msra.mxu0 %v591
        %727 = vmatpush.bf16.msra.mxu0 %v589
        %728 = vmatpush.bf16.msra.mxu0 %v587
        %729 = vmatmul.bf16.gmra.mxu0 %v436
        %v730 = vpop.f32.mrf.mxu0
        %v731 = vadd.f32 0.0, %v730
        %v732 = vpop.f32.mrf.mxu0
        %733 = vdwg.mxu0
        %734 = vmatpush.bf16.msra.mxu0 %v617
        %735 = vmatpush.bf16.msra.mxu0 %v615
        %736 = vmatpush.bf16.msra.mxu0 %v613
        %737 = vmatpush.bf16.msra.mxu0 %v611
        %738 = vmatpush.bf16.msra.mxu0 %v609
        %739 = vmatpush.bf16.msra.mxu0 %v607
        %740 = vmatpush.bf16.msra.mxu0 %v605
        %741 = vmatpush.bf16.msra.mxu0 %v603
        %742 = vmatmul.bf16.gmra.mxu0 %v437
        %v743 = vpop.f32.mrf.mxu0
        %v744 = vadd.f32 %v731, %v743
        %v745 = vpop.f32.mrf.mxu0
        %746 = vdwg.mxu0
        %747 = vmatpush.bf16.msra.mxu0 %v633
        %748 = vmatpush.bf16.msra.mxu0 %v631
        %749 = vmatpush.bf16.msra.mxu0 %v629
        %750 = vmatpush.bf16.msra.mxu0 %v627
        %751 = vmatpush.bf16.msra.mxu0 %v625
        %752 = vmatpush.bf16.msra.mxu0 %v623
        %753 = vmatpush.bf16.msra.mxu0 %v621
        %754 = vmatpush.bf16.msra.mxu0 %v619
        %755 = vmatmul.bf16.gmra.mxu0 %v438
        %v756 = vpop.f32.mrf.mxu0
        %v757 = vadd.f32 %v744, %v756
        %v758 = vpop.f32.mrf.mxu0
        %759 = vdwg.mxu0
        %v762 = vunpack.c.l.b16 %v331
        %v763 = vunpack.c.h.b16 %v331
        %v764 = vunpack.c.l.b16 %v332
        %v765 = vpack.c.b16 %v762, %v762
        %v766 = vpack.c.b16 %v763, %v763
        %v767 = vpack.c.b16 %v764, %v764
        %v819 = vunpack.c.l.b16 %v335
        %v820 = vunpack.c.h.b16 %v335
        %v821 = vunpack.c.l.b16 %v336
        %v822 = vunpack.c.h.b16 %v336
        %v823 = vunpack.c.l.b16 %v337
        %v824 = vunpack.c.h.b16 %v337
        %v825 = vunpack.c.l.b16 %v338
        %v826 = vunpack.c.h.b16 %v338
        %v827 = vunpack.c.l.b16 %v339
        %v828 = vunpack.c.h.b16 %v339
        %v829 = vunpack.c.l.b16 %v340
        %v830 = vunpack.c.h.b16 %v340
        %v831 = vunpack.c.l.b16 %v341
        %v832 = vunpack.c.h.b16 %v341
        %v833 = vunpack.c.l.b16 %v342
        %v834 = vunpack.c.h.b16 %v342
        %v835 = vunpack.c.l.b16 %v343
        %v836 = vunpack.c.h.b16 %v343
        %v837 = vunpack.c.l.b16 %v344
        %v838 = vunpack.c.h.b16 %v344
        %v839 = vunpack.c.l.b16 %v345
        %v840 = vunpack.c.h.b16 %v345
        %v841 = vunpack.c.l.b16 %v346
        %v842 = vunpack.c.h.b16 %v346
        %v843 = vunpack.c.l.b16 %v347
        %v844 = vunpack.c.h.b16 %v347
        %v845 = vunpack.c.l.b16 %v348
        %v846 = vunpack.c.h.b16 %v348
        %v847 = vunpack.c.l.b16 %v349
        %v848 = vunpack.c.h.b16 %v349
        %v849 = vunpack.c.l.b16 %v350
        %v850 = vunpack.c.h.b16 %v350
        %v851 = vunpack.c.l.b16 %v351
        %v852 = vunpack.c.h.b16 %v351
        %v853 = vunpack.c.l.b16 %v352
        %v854 = vunpack.c.h.b16 %v352
        %v855 = vunpack.c.l.b16 %v353
        %v856 = vunpack.c.h.b16 %v353
        %v857 = vunpack.c.l.b16 %v354
        %v858 = vunpack.c.h.b16 %v354
        %v859 = vunpack.c.l.b16 %v355
        %v860 = vunpack.c.h.b16 %v355
        %v861 = vunpack.c.l.b16 %v356
        %v862 = vunpack.c.h.b16 %v356
        %v863 = vunpack.c.l.b16 %v357
        %v864 = vunpack.c.h.b16 %v357
        %v865 = vunpack.c.l.b16 %v358
        %v866 = vunpack.c.h.b16 %v358
        %v867 = vunpack.c.l.b16 %v359
        %v868 = vunpack.c.h.b16 %v359
        %v869 = vunpack.c.l.b16 %v360
        %v870 = vunpack.c.h.b16 %v360
        %v871 = vunpack.c.l.b16 %v361
        %v872 = vunpack.c.h.b16 %v361
        %v873 = vunpack.c.l.b16 %v362
        %v874 = vunpack.c.h.b16 %v362
        %v875 = vunpack.c.l.b16 %v363
        %v876 = vunpack.c.h.b16 %v363
        %v877 = vunpack.c.l.b16 %v364
        %v878 = vunpack.c.h.b16 %v364
        %v879 = vunpack.c.l.b16 %v365
        %v880 = vunpack.c.h.b16 %v365
        %v881 = vunpack.c.l.b16 %v366
        %v882 = vunpack.c.h.b16 %v366
        %v883 = vunpack.c.l.b16 %v367
        %v884 = vunpack.c.h.b16 %v367
        %v885 = vunpack.c.l.b16 %v368
        %v886 = vunpack.c.h.b16 %v368
        %v887 = vunpack.c.l.b16 %v369
        %v888 = vunpack.c.h.b16 %v369
        %v889 = vunpack.c.l.b16 %v370
        %v890 = vunpack.c.h.b16 %v370
        %v891 = vunpack.c.l.b16 %v371
        %v892 = vunpack.c.h.b16 %v371
        %v893 = vunpack.c.l.b16 %v372
        %v894 = vunpack.c.h.b16 %v372
        %v895 = vunpack.c.l.b16 %v373
        %v896 = vunpack.c.h.b16 %v373
        %v897 = vunpack.c.l.b16 %v374
        %v898 = vunpack.c.h.b16 %v374
        %v899 = vunpack.c.l.b16 %v375
        %v900 = vunpack.c.h.b16 %v375
        %v901 = vunpack.c.l.b16 %v376
        %v902 = vunpack.c.h.b16 %v376
        %v903 = vunpack.c.l.b16 %v377
        %v904 = vunpack.c.h.b16 %v377
        %v905 = vunpack.c.l.b16 %v378
        %v906 = vunpack.c.h.b16 %v378
        %v907 = vunpack.c.l.b16 %v379
        %v908 = vunpack.c.h.b16 %v379
        %v909 = vunpack.c.l.b16 %v380
        %v910 = vunpack.c.h.b16 %v380
        %v911 = vunpack.c.l.b16 %v381
        %v912 = vunpack.c.h.b16 %v381
        %v913 = vunpack.c.l.b16 %v382
        %v914 = vunpack.c.h.b16 %v382
        %v915 = vpack.c.b16 %v821, %v819
        %v916 = vpack.c.b16 %v822, %v820
        %v917 = vpack.c.b16 %v825, %v823
        %v918 = vpack.c.b16 %v826, %v824
        %v919 = vpack.c.b16 %v829, %v827
        %v920 = vpack.c.b16 %v830, %v828
        %v921 = vpack.c.b16 %v833, %v831
        %v922 = vpack.c.b16 %v834, %v832
        %v923 = vpack.c.b16 %v837, %v835
        %v924 = vpack.c.b16 %v838, %v836
        %v925 = vpack.c.b16 %v841, %v839
        %v926 = vpack.c.b16 %v842, %v840
        %v927 = vpack.c.b16 %v845, %v843
        %v928 = vpack.c.b16 %v846, %v844
        %v929 = vpack.c.b16 %v849, %v847
        %v930 = vpack.c.b16 %v850, %v848
        %v931 = vpack.c.b16 %v853, %v851
        %v932 = vpack.c.b16 %v854, %v852
        %v933 = vpack.c.b16 %v857, %v855
        %v934 = vpack.c.b16 %v858, %v856
        %v935 = vpack.c.b16 %v861, %v859
        %v936 = vpack.c.b16 %v862, %v860
        %v937 = vpack.c.b16 %v865, %v863
        %v938 = vpack.c.b16 %v866, %v864
        %v939 = vpack.c.b16 %v869, %v867
        %v940 = vpack.c.b16 %v870, %v868
        %v941 = vpack.c.b16 %v873, %v871
        %v942 = vpack.c.b16 %v874, %v872
        %v943 = vpack.c.b16 %v877, %v875
        %v944 = vpack.c.b16 %v878, %v876
        %v945 = vpack.c.b16 %v881, %v879
        %v946 = vpack.c.b16 %v882, %v880
        %v947 = vpack.c.b16 %v885, %v883
        %v948 = vpack.c.b16 %v886, %v884
        %v949 = vpack.c.b16 %v889, %v887
        %v950 = vpack.c.b16 %v890, %v888
        %v951 = vpack.c.b16 %v893, %v891
        %v952 = vpack.c.b16 %v894, %v892
        %v953 = vpack.c.b16 %v897, %v895
        %v954 = vpack.c.b16 %v898, %v896
        %v955 = vpack.c.b16 %v901, %v899
        %v956 = vpack.c.b16 %v902, %v900
        %v957 = vpack.c.b16 %v905, %v903
        %v958 = vpack.c.b16 %v906, %v904
        %v959 = vpack.c.b16 %v909, %v907
        %v960 = vpack.c.b16 %v910, %v908
        %v961 = vpack.c.b16 %v913, %v911
        %v962 = vpack.c.b16 %v914, %v912
        %1011 = vmatpush.bf16.msra.mxu0 %v929
        %1012 = vmatpush.bf16.msra.mxu0 %v927
        %1013 = vmatpush.bf16.msra.mxu0 %v925
        %1014 = vmatpush.bf16.msra.mxu0 %v923
        %1015 = vmatpush.bf16.msra.mxu0 %v921
        %1016 = vmatpush.bf16.msra.mxu0 %v919
        %1017 = vmatpush.bf16.msra.mxu0 %v917
        %1018 = vmatpush.bf16.msra.mxu0 %v915
        %1019 = vmatmul.bf16.gmra.mxu0 %v765
        %v1020 = vpop.f32.mrf.mxu0
        %v1021 = vadd.f32 %v718, %v1020
        %v1022 = vpop.f32.mrf.mxu0
        %1023 = vdwg.mxu0
        %1024 = vmatpush.bf16.msra.mxu0 %v945
        %1025 = vmatpush.bf16.msra.mxu0 %v943
        %1026 = vmatpush.bf16.msra.mxu0 %v941
        %1027 = vmatpush.bf16.msra.mxu0 %v939
        %1028 = vmatpush.bf16.msra.mxu0 %v937
        %1029 = vmatpush.bf16.msra.mxu0 %v935
        %1030 = vmatpush.bf16.msra.mxu0 %v933
        %1031 = vmatpush.bf16.msra.mxu0 %v931
        %1032 = vmatmul.bf16.gmra.mxu0 %v766
        %v1033 = vpop.f32.mrf.mxu0
        %v1034 = vadd.f32 %v1021, %v1033
        %v1035 = vpop.f32.mrf.mxu0
        %1036 = vdwg.mxu0
        %1037 = vmatpush.bf16.msra.mxu0 %v961
        %1038 = vmatpush.bf16.msra.mxu0 %v959
        %1039 = vmatpush.bf16.msra.mxu0 %v957
        %1040 = vmatpush.bf16.msra.mxu0 %v955
        %1041 = vmatpush.bf16.msra.mxu0 %v953
        %1042 = vmatpush.bf16.msra.mxu0 %v951
        %1043 = vmatpush.bf16.msra.mxu0 %v949
        %1044 = vmatpush.bf16.msra.mxu0 %v947
        %1045 = vmatmul.bf16.gmra.mxu0 %v767
        %v1046 = vpop.f32.mrf.mxu0
        %v1047 = vadd.f32 %v1034, %v1046
        %v1048 = vpop.f32.mrf.mxu0
        %1049 = vdwg.mxu0
        %1050 = vmatpush.bf16.msra.mxu0 %v930
        %1051 = vmatpush.bf16.msra.mxu0 %v928
        %1052 = vmatpush.bf16.msra.mxu0 %v926
        %1053 = vmatpush.bf16.msra.mxu0 %v924
        %1054 = vmatpush.bf16.msra.mxu0 %v922
        %1055 = vmatpush.bf16.msra.mxu0 %v920
        %1056 = vmatpush.bf16.msra.mxu0 %v918
        %1057 = vmatpush.bf16.msra.mxu0 %v916
        %1058 = vmatmul.bf16.gmra.mxu0 %v765
        %v1059 = vpop.f32.mrf.mxu0
        %v1060 = vadd.f32 %v757, %v1059
        %v1061 = vpop.f32.mrf.mxu0
        %1062 = vdwg.mxu0
        %1063 = vmatpush.bf16.msra.mxu0 %v946
        %1064 = vmatpush.bf16.msra.mxu0 %v944
        %1065 = vmatpush.bf16.msra.mxu0 %v942
        %1066 = vmatpush.bf16.msra.mxu0 %v940
        %1067 = vmatpush.bf16.msra.mxu0 %v938
        %1068 = vmatpush.bf16.msra.mxu0 %v936
        %1069 = vmatpush.bf16.msra.mxu0 %v934
        %1070 = vmatpush.bf16.msra.mxu0 %v932
        %1071 = vmatmul.bf16.gmra.mxu0 %v766
        %v1072 = vpop.f32.mrf.mxu0
        %v1073 = vadd.f32 %v1060, %v1072
        %v1074 = vpop.f32.mrf.mxu0
        %1075 = vdwg.mxu0
        %1076 = vmatpush.bf16.msra.mxu0 %v962
        %1077 = vmatpush.bf16.msra.mxu0 %v960
        %1078 = vmatpush.bf16.msra.mxu0 %v958
        %1079 = vmatpush.bf16.msra.mxu0 %v956
        %1080 = vmatpush.bf16.msra.mxu0 %v954
        %1081 = vmatpush.bf16.msra.mxu0 %v952
        %1082 = vmatpush.bf16.msra.mxu0 %v950
        %1083 = vmatpush.bf16.msra.mxu0 %v948
        %1084 = vmatmul.bf16.gmra.mxu0 %v767
        %v1085 = vpop.f32.mrf.mxu0
        %v1086 = vadd.f32 %v1073, %v1085
        %v1087 = vpop.f32.mrf.mxu0
        %1088 = vdwg.mxu0
        %v1089 = vld [vmem:[%s4] sm:$0x3]
        %v1091 = vperm.slane %v1089, 0
        %v1092 = vperm.slane %v1089, 1
        %v1095 = vadd.f32 %v1047, %v1091
        %v1096 = vadd.f32 %v1086, %v1092
        %v1097 = vmax.f32 %v1095, 0.0
        %v1098 = vmax.f32 %v1096, 0.0
        %v1099 = vld [vmem:[%s5] sm:$0xf]
        %v1100 = vld [vmem:[%s5 + $0x4] sm:$0xf]
        %v1101 = vld [vmem:[%s5 + $0x8] sm:$0xf]
        %v1102 = vld [vmem:[%s5 + $0xc] sm:$0xf]
        %v1103 = vld [vmem:[%s5 + $0x10] sm:$0xf]
        %v1104 = vld [vmem:[%s5 + $0x14] sm:$0xf]
        %v1105 = vld [vmem:[%s5 + $0x18] sm:$0xf]
        %v1106 = vld [vmem:[%s5 + $0x1c] sm:$0xf]
        %v1107 = vld [vmem:[%s5 + $0x20] sm:$0xf]
        %v1108 = vld [vmem:[%s5 + $0x24] sm:$0xf]
        %v1109 = vld [vmem:[%s5 + $0x28] sm:$0xf]
        %v1110 = vld [vmem:[%s5 + $0x2c] sm:$0xf]
        %v1111 = vld [vmem:[%s5 + $0x30] sm:$0xf]
        %v1112 = vld [vmem:[%s5 + $0x34] sm:$0xf]
        %v1113 = vld [vmem:[%s5 + $0x38] sm:$0xf]
        %v1114 = vld [vmem:[%s5 + $0x3c] sm:$0xf]
        %v1115 = vld [vmem:[%s5 + $0x40] sm:$0xf]
        %v1116 = vld [vmem:[%s5 + $0x44] sm:$0xf]
        %v1117 = vld [vmem:[%s5 + $0x48] sm:$0xf]
        %v1118 = vld [vmem:[%s5 + $0x4c] sm:$0xf]
        %v1119 = vld [vmem:[%s5 + $0x50] sm:$0xf]
        %v1120 = vld [vmem:[%s5 + $0x54] sm:$0xf]
        %v1121 = vld [vmem:[%s5 + $0x58] sm:$0xf]
        %v1122 = vld [vmem:[%s5 + $0x5c] sm:$0xf]
        %v1123 = vld [vmem:[%s5 + $0x60] sm:$0xf]
        %v1124 = vld [vmem:[%s5 + $0x64] sm:$0xf]
        %v1125 = vld [vmem:[%s5 + $0x68] sm:$0xf]
        %v1126 = vld [vmem:[%s5 + $0x6c] sm:$0xf]
        %v1127 = vld [vmem:[%s5 + $0x70] sm:$0xf]
        %v1128 = vld [vmem:[%s5 + $0x74] sm:$0xf]
        %v1129 = vld [vmem:[%s5 + $0x78] sm:$0xf]
        %v1130 = vld [vmem:[%s5 + $0x7c] sm:$0xf]
        %v1131 = vld [vmem:[%s6] sm:$0x1]
        %v1133 = vperm.slane %v1131, 0
        %v1167 = vunpack.c.l.b16 %v1099
        %v1168 = vunpack.c.l.b16 %v1100
        %v1169 = vunpack.c.l.b16 %v1101
        %v1170 = vunpack.c.l.b16 %v1102
        %v1171 = vunpack.c.l.b16 %v1103
        %v1172 = vunpack.c.l.b16 %v1104
        %v1173 = vunpack.c.l.b16 %v1105
        %v1174 = vunpack.c.l.b16 %v1106
        %v1175 = vunpack.c.l.b16 %v1107
        %v1176 = vunpack.c.l.b16 %v1108
        %v1177 = vunpack.c.l.b16 %v1109
        %v1178 = vunpack.c.l.b16 %v1110
        %v1179 = vunpack.c.l.b16 %v1111
        %v1180 = vunpack.c.l.b16 %v1112
        %v1181 = vunpack.c.l.b16 %v1113
        %v1182 = vunpack.c.l.b16 %v1114
        %v1183 = vunpack.c.l.b16 %v1115
        %v1184 = vunpack.c.l.b16 %v1116
        %v1185 = vunpack.c.l.b16 %v1117
        %v1186 = vunpack.c.l.b16 %v1118
        %v1187 = vunpack.c.l.b16 %v1119
        %v1188 = vunpack.c.l.b16 %v1120
        %v1189 = vunpack.c.l.b16 %v1121
        %v1190 = vunpack.c.l.b16 %v1122
        %v1191 = vunpack.c.l.b16 %v1123
        %v1192 = vunpack.c.l.b16 %v1124
        %v1193 = vunpack.c.l.b16 %v1125
        %v1194 = vunpack.c.l.b16 %v1126
        %v1195 = vunpack.c.l.b16 %v1127
        %v1196 = vunpack.c.l.b16 %v1128
        %v1197 = vunpack.c.l.b16 %v1129
        %v1198 = vunpack.c.l.b16 %v1130
        %v1199 = vpack.c.b16 %v1168, %v1167
        %v1200 = vpack.c.b16 %v1170, %v1169
        %v1201 = vpack.c.b16 %v1172, %v1171
        %v1202 = vpack.c.b16 %v1174, %v1173
        %v1203 = vpack.c.b16 %v1176, %v1175
        %v1204 = vpack.c.b16 %v1178, %v1177
        %v1205 = vpack.c.b16 %v1180, %v1179
        %v1206 = vpack.c.b16 %v1182, %v1181
        %v1207 = vpack.c.b16 %v1184, %v1183
        %v1208 = vpack.c.b16 %v1186, %v1185
        %v1209 = vpack.c.b16 %v1188, %v1187
        %v1210 = vpack.c.b16 %v1190, %v1189
        %v1211 = vpack.c.b16 %v1192, %v1191
        %v1212 = vpack.c.b16 %v1194, %v1193
        %v1213 = vpack.c.b16 %v1196, %v1195
        %v1214 = vpack.c.b16 %v1198, %v1197
        %1231 = vmatpush.bf16.msra.mxu0 %v1206
        %1232 = vmatpush.bf16.msra.mxu0 %v1205
        %1233 = vmatpush.bf16.msra.mxu0 %v1204
        %1234 = vmatpush.bf16.msra.mxu0 %v1203
        %1235 = vmatpush.bf16.msra.mxu0 %v1202
        %1236 = vmatpush.bf16.msra.mxu0 %v1201
        %1237 = vmatpush.bf16.msra.mxu0 %v1200
        %1238 = vmatpush.bf16.msra.mxu0 %v1199
        %1239 = vmatmul.f32.gmra.mxu0 %v1097
        %v1240 = vpop.f32.mrf.mxu0
        %v1241 = vadd.f32 %v1133, %v1240
        %1242 = vdwg.mxu0
        %1243 = vmatpush.bf16.msra.mxu0 %v1214
        %1244 = vmatpush.bf16.msra.mxu0 %v1213
        %1245 = vmatpush.bf16.msra.mxu0 %v1212
        %1246 = vmatpush.bf16.msra.mxu0 %v1211
        %1247 = vmatpush.bf16.msra.mxu0 %v1210
        %1248 = vmatpush.bf16.msra.mxu0 %v1209
        %1249 = vmatpush.bf16.msra.mxu0 %v1208
        %1250 = vmatpush.bf16.msra.mxu0 %v1207
        %1251 = vmatmul.f32.gmra.mxu0 %v1098
        %v1252 = vpop.f32.mrf.mxu0
        %v1253 = vadd.f32 %v1241, %v1252
        %1254 = vdwg.mxu0
        %1255 = vst [vmem:[%s330] sm:$0xff] %v1253
        %p1256 = scmp.lt.s32.totalorder %s20, 1
        %s1257 = scalar_select %p1256, %s20, 1
        %s1258 = smul.addr %s1257, 8
        %s1259 = scalar_lea.vmem %s7, %s1258
        // Predicated region
        $region57: #{nli_classifier.1} parent=47 // pred_check
          %p1260 = pneg %p195
        $region58: #{nli_classifier.1} parent=47 // pred_check_branch
          %1262 = sbr.rel (%p1260) target = $region60
        $region59: #{nli_classifier.1} parent=47 // pred_region
          _
        $region60: #{nli_classifier.1} parent=47 // pred_fallthru
          _
      $region48: #{nli_classifier.1} parent=5 // pred_fallthru
        _
      %p1263 = scmp.le.s32.totalorder 2, %s15
      // Predicated region
      $region61: #{nli_classifier.1} parent=5 // pred_check
        %p1264 = pneg %p1263
      $region62: #{nli_classifier.1} parent=5 // pred_check_branch
        %1266 = sbr.rel (%p1264) target = $region64
      $region63: #{nli_classifier.1} parent=5 // pred_region
        %s1267 = ssub.s32 %s15, 2
        // Predicated region
        $region65: #{nli_classifier.1} parent=63 // pred_check
          %p1268 = pneg %p201
        $region66: #{nli_classifier.1} parent=63 // pred_check_branch
          %1270 = sbr.rel (%p1268) target = $region68
        $region67: #{nli_classifier.1} parent=63 // pred_region
          %p1271 = scmp.lt.s32.totalorder %s21, 1
          %s1272 = scalar_select %p1271, %s21, 1
          %s1273 = smul.addr %s1272, 8
          %s1274 = scalar_lea.vmem %s7, %s1273
        $region68: #{nli_classifier.1} parent=63 // pred_fallthru
          _
      $region64: #{nli_classifier.1} parent=5 // pred_fallthru
        _
    $region6: #{nli_classifier.1} parent=1 // loop_footer
      %s19 = sadd.s32 1, %s15
    $region7: #{nli_classifier.1} parent=1 // loop_footer_branch
      %14 = sbr.rel target = $region3
    $region8: #{nli_classifier.1} parent=1 // loop_exit
      _
    %1275 = vsyncpa [#allocation3], 1
    %s1276 = scalar_lea.sflag [#allocation3], 1
    %1277 = vsyncpa %s1276, 1
    %1278 = vsyncpa [#allocation5], 1

</llo_original>
